<compile_context>
chip_gen: v5e
topology: v5e:2x2
jax: 0.10.0
libtpu: 0.0.40
codegen_flags: <defaults>
</compile_context>

<pallas_src>
import functools

import jax
import jax.numpy as jnp
from jax import lax
from jax.experimental import pallas as pl
from jax.experimental.pallas import tpu as pltpu


def _round_up(x, m):
    return ((x + m - 1) // m) * m


def _pad2d(a, shape):
    return jnp.pad(a, [(0, shape[0] - a.shape[0]), (0, shape[1] - a.shape[1])])


def _padded_dims(S, H):
    # S sits on lanes of the x stream: keep its padding minimal (extra lanes are
    # extra HBM bytes on the dominant stream).  H gets bf16-native padding
    # (16 sublanes), or full 128 alignment once it is MXU-tile sized.
    S_pad = _round_up(S, 8)
    H_pad = _round_up(H, 128) if H >= 128 else _round_up(H, 16)
    return S_pad, H_pad


def critic_kernel(x_ref, w1_ref, b1_ref, w2_ref, b2_ref, w3_ref, b3_ref, out_ref):
    """Fused 3-layer MLP for one batch tile.

    x_ref : (block_b, S_pad) bf16     w1_ref: (H_pad, S_pad) bf16   b1_ref: (H_pad, 1) f32
    w2_ref: (H_pad, H_pad) bf16       b2_ref: (H_pad, 1) f32
    w3_ref: (H_pad, 1) bf16           b3_ref: (1, 1) f32 in SMEM
    out   : (1, block_b) f32          (lane-dense value row)
    """
    x = x_ref[...]  # already bf16 (cast fused into the wrapper-side pad)

    # Layer 1: contract the last dims of w1 and x (rhs-transposed matmul on the
    # MXU, f32 accumulate).  Batch lands on the lane axis: h1 = (H_pad, block_b).
    h1 = lax.dot_general(w1_ref[...], x,
                         dimension_numbers=(((1,), (1,)), ((), ())),
                         preferred_element_type=jnp.float32)
    h1 = jnp.maximum(h1 + b1_ref[...], 0.0)

    # Layer 2: (H_pad, H_pad) @ (H_pad, block_b), f32 accumulate.
    h2 = jnp.dot(w2_ref[...], h1.astype(jnp.bfloat16),
                 preferred_element_type=jnp.float32)
    h2 = jnp.maximum(h2 + b2_ref[...], 0.0)

    # Layer 3 (value head, out_features = 1): VPU multiply + XLU sublane
    # reduction instead of a degenerate 1-wide matmul; result stays lane-dense.
    v = jnp.sum(h2 * w3_ref[...].astype(jnp.float32), axis=0, keepdims=True)
    out_ref[...] = (v + b3_ref[0, 0]).astype(out_ref.dtype)


@functools.partial(jax.jit, static_argnames=("block_b", "single_buffer_weights"))
def _critic_forward_impl(state, w1, b1, w2, b2, w3, b3, *, block_b,
                         single_buffer_weights):
    B, S = state.shape
    H = w1.shape[0]
    S_pad, H_pad = _padded_dims(S, H)
    B_pad = _round_up(B, block_b)
    grid = (B_pad // block_b,)

    # Layout plumbing (fused into this jit): pad + cast only, NO transpose of x.
    x = _pad2d(state.astype(jnp.bfloat16), (B_pad, S_pad))            # (B_pad, S_pad)
    w1p = _pad2d(w1, (H_pad, S_pad)).astype(jnp.bfloat16)             # (H_pad, S_pad)
    b1p = _pad2d(b1.reshape(H, 1), (H_pad, 1)).astype(jnp.float32)
    w2p = _pad2d(w2, (H_pad, H_pad)).astype(jnp.bfloat16)             # (H_pad, H_pad)
    b2p = _pad2d(b2.reshape(H, 1), (H_pad, 1)).astype(jnp.float32)
    w3p = _pad2d(w3.T, (H_pad, 1)).astype(jnp.bfloat16)               # (H_pad, 1)
    b3p = b3.reshape(1, 1).astype(jnp.float32)

    # VMEM budget: resident weights (single or double buffered), double-buffered
    # x / out tiles, and the two f32 (H_pad, block_b) hidden temporaries.
    weight_bytes = (w1p.size + w2p.size + w3p.size) * 2 + (b1p.size + b2p.size) * 4
    x_tile_bytes = block_b * S_pad * 2
    out_tile_bytes = block_b * 4
    act_bytes = 2 * H_pad * block_b * 4
    weight_bufs = 1 if single_buffer_weights else 2
    need = weight_bufs * weight_bytes + 2 * (x_tile_bytes + out_tile_bytes) + act_bytes
    vmem_limit = int(min(64 * 1024 * 1024, max(16 * 1024 * 1024, 2 * need)))

    flops = int(2 * B_pad * (S_pad * H_pad + H_pad * H_pad + H_pad))
    bytes_accessed = int(B_pad * S_pad * 2 + weight_bytes + 4 + B_pad * 4)
    cost = pl.CostEstimate(flops=flops, transcendentals=0,
                           bytes_accessed=bytes_accessed)

    if single_buffer_weights:
        def resident(shape):
            # Constant index_map -> the block never changes; one VMEM buffer is
            # enough (avoid double-buffering w2 etc.; matters on v7x's 64 MiB).
            return pl.BlockSpec(shape, lambda i: (0, 0),
                                pipeline_mode=pl.Buffered(1))
    else:
        def resident(shape):
            return pl.BlockSpec(shape, lambda i: (0, 0))

    out = pl.pallas_call(
        critic_kernel,
        out_shape=jax.ShapeDtypeStruct((1, B_pad), jnp.float32),
        grid_spec=pltpu.PrefetchScalarGridSpec(
            num_scalar_prefetch=0,
            grid=grid,
            in_specs=[
                pl.BlockSpec((block_b, S_pad), lambda i: (i, 0)),    # state tile (bf16)
                resident((H_pad, S_pad)),                            # w1 (resident)
                resident((H_pad, 1)),                                # b1
                resident((H_pad, H_pad)),                            # w2 (resident)
                resident((H_pad, 1)),                                # b2
                resident((H_pad, 1)),                                # w3
                pl.BlockSpec(memory_space=pltpu.MemorySpace.SMEM),   # b3 scalar
            ],
            out_specs=pl.BlockSpec((1, block_b), lambda i: (0, i)),  # lane-dense values
        ),
        compiler_params=pltpu.CompilerParams(
            dimension_semantics=("parallel",),
            vmem_limit_bytes=vmem_limit,
        ),
        cost_estimate=cost,
    )(x, w1p, b1p, w2p, b2p, w3p, b3p)

    # Padded batch lanes (out[0, B:]) hold bias-driven garbage (ReLU(b1) pushed
    # through the net); they are sliced off here and must never be read.
    return out[0, :B].reshape(B, 1)


_SINGLE_BUFFER_OK = None  # resolved on first call: does pl.Buffered(1) lower?


def critic_forward(state, params, *, block_b=None):
    """Run the Critic MLP via a Pallas TPU kernel.

    state : (B, state_dim) float32 (or bf16, ideally pre-cast by the producer)
    params: PyTorch-layout f32 params: w1 (H,S), b1 (H,), w2 (H,H), b2 (H,), w3 (1,H), b3 (1,)
    returns (B, 1) float32 value estimates.
    """
    global _SINGLE_BUFFER_OK
    B, S = state.shape
    H = params["w1"].shape[0]
    S_pad, H_pad = _padded_dims(S, H)

    if block_b is None:
        # >= ~256 KiB of bf16 state per grid step (amortizes the ~0.35 us fixed
        # per-step cost), capped so the f32 hidden tiles (H_pad x block_b) stay
        # a few MiB and the grid length stays >= 2 for large B (v7x megacore).
        by_bytes = (256 * 1024) // (S_pad * 2)
        by_hidden = (4 * 1024 * 1024) // (H_pad * 4)
        half_b = pl.cdiv(B, 2)
        block_b = min(by_bytes, by_hidden, 8192, max(half_b, 1))
    block_b = max(128, _round_up(int(block_b), 128))

    args = (state, params["w1"], params["b1"], params["w2"], params["b2"],
            params["w3"], params["b3"])

    if _SINGLE_BUFFER_OK is None:
        try:
            out = _critic_forward_impl(*args, block_b=block_b,
                                       single_buffer_weights=True)
            _SINGLE_BUFFER_OK = True
            return out
        except Exception:
            # This Pallas/Mosaic build rejects pipeline_mode on the top-level
            # grid: fall back to default (double-buffered) resident weights.
            _SINGLE_BUFFER_OK = False
    return _critic_forward_impl(*args, block_b=block_b,
                                single_buffer_weights=_SINGLE_BUFFER_OK)


def init_critic_params(key, state_dim, hidden_dim):
    """Deterministic synthetic parameters in PyTorch nn.Linear layout (out, in), f32."""
    k1, k2, k3, k4, k5, k6 = jax.random.split(key, 6)
    s1 = 1.0 / jnp.sqrt(state_dim)
    s2 = 1.0 / jnp.sqrt(hidden_dim)
    return {
        "w1": jax.random.uniform(k1, (hidden_dim, state_dim), jnp.float32, -s1, s1),
        "b1": jax.random.uniform(k2, (hidden_dim,), jnp.float32, -s1, s1),
        "w2": jax.random.uniform(k3, (hidden_dim, hidden_dim), jnp.float32, -s2, s2),
        "b2": jax.random.uniform(k4, (hidden_dim,), jnp.float32, -s2, s2),
        "w3": jax.random.uniform(k5, (1, hidden_dim), jnp.float32, -s2, s2),
        "b3": jax.random.uniform(k6, (1,), jnp.float32, -s2, s2),
    }


def critic_reference(state, p):
    """Pure-JAX f32 reference of the PyTorch forward pass."""
    h1 = jnp.maximum(state @ p["w1"].T + p["b1"], 0.0)
    h2 = jnp.maximum(h1 @ p["w2"].T + p["b2"], 0.0)
    return h2 @ p["w3"].T + p["b3"]


if __name__ == "__main__":
    key = jax.random.PRNGKey(0)
    k_param, k_state, k_state2 = jax.random.split(key, 3)

    batch = 8
    state_dim = 16
    hidden_dim = 32

    params = init_critic_params(k_param, state_dim, hidden_dim)

    # Small single-tile case (default block_b).
    state = jax.random.normal(k_state, (batch, state_dim), jnp.float32)
    value = jax.block_until_ready(critic_forward(state, params))
    ref = critic_reference(state, params)
    assert value.shape == (batch, 1), value.shape
    # bf16 MXU operands / bf16 state with f32 accumulation -> loosened tolerance.
    assert jnp.allclose(value, ref, atol=5e-2, rtol=5e-2), (value, ref)

    # Multi-tile case (grid > 1, ragged batch padded) to exercise the pipeline.
    batch2 = 300
    state2 = jax.random.normal(k_state2, (batch2, state_dim), jnp.float32)
    value2 = jax.block_until_ready(critic_forward(state2, params, block_b=128))
    ref2 = critic_reference(state2, params)
    assert value2.shape == (batch2, 1), value2.shape
    assert jnp.allclose(value2, ref2, atol=5e-2, rtol=5e-2)

    print("KERNEL_OK")
</pallas_src>

<mosaic_0001>
module attributes {stable_mosaic.version = 11 : i64} {
  func.func @critic_kernel(%arg0: i32, %arg1: memref<128x16xbf16, #tpu.memory_space<vmem>>, %arg2: memref<32x16xbf16, #tpu.memory_space<vmem>>, %arg3: memref<32x1xf32, #tpu.memory_space<vmem>>, %arg4: memref<32x32xbf16, #tpu.memory_space<vmem>>, %arg5: memref<32x1xf32, #tpu.memory_space<vmem>>, %arg6: memref<32x1xbf16, #tpu.memory_space<vmem>>, %arg7: memref<1x1xf32, #tpu.memory_space<smem>>, %arg8: memref<1x128xf32, #tpu.memory_space<vmem>>) attributes {dimension_semantics = [#tpu.dimension_semantics<parallel>], iteration_bounds = array<i64: 1>, scalar_prefetch = 0 : i64, scratch_operands = 0 : i64, tpu.core_type = #tpu.core_type<tc>, window_params = [{transform_indices = @transform_0, window_bounds = array<i64: 128, 16>}, {pipeline_mode = #tpu.pipeline_mode<synchronous>, transform_indices = @transform_1, window_bounds = array<i64: 32, 16>}, {pipeline_mode = #tpu.pipeline_mode<synchronous>, transform_indices = @transform_2, window_bounds = array<i64: 32, 1>}, {pipeline_mode = #tpu.pipeline_mode<synchronous>, transform_indices = @transform_3, window_bounds = array<i64: 32, 32>}, {pipeline_mode = #tpu.pipeline_mode<synchronous>, transform_indices = @transform_4, window_bounds = array<i64: 32, 1>}, {pipeline_mode = #tpu.pipeline_mode<synchronous>, transform_indices = @transform_5, window_bounds = array<i64: 32, 1>}, {transform_indices = @transform_6, window_bounds = array<i64: 1, 1>}, {transform_indices = @transform_7, window_bounds = array<i64: 1, 128>}]} {
    %c0 = arith.constant 0 : index
    %c0_0 = arith.constant 0 : index
    %0 = vector.load %arg1[%c0, %c0_0] : memref<128x16xbf16, #tpu.memory_space<vmem>>, vector<128x16xbf16>
    %c0_1 = arith.constant 0 : index
    %c0_2 = arith.constant 0 : index
    %1 = vector.load %arg2[%c0_1, %c0_2] : memref<32x16xbf16, #tpu.memory_space<vmem>>, vector<32x16xbf16>
    %cst = arith.constant dense<0.000000e+00> : vector<32x128xf32>
    %2 = tpu.matmul %1, %0, %cst {dimension_numbers = #tpu.dot_dimension_numbers<[1], [1], [0], [0], [0, 0, 1, 0], [], []>} : vector<32x16xbf16>, vector<128x16xbf16>, vector<32x128xf32> -> vector<32x128xf32>
    %c0_3 = arith.constant 0 : index
    %c0_4 = arith.constant 0 : index
    %3 = vector.load %arg3[%c0_3, %c0_4] : memref<32x1xf32, #tpu.memory_space<vmem>>, vector<32x1xf32>
    %4 = vector.broadcast %3 : vector<32x1xf32> to vector<32x128xf32>
    %5 = arith.addf %2, %4 : vector<32x128xf32>
    %cst_5 = arith.constant 0.000000e+00 : f32
    %6 = vector.broadcast %cst_5 : f32 to vector<32x128xf32>
    %7 = arith.maximumf %5, %6 : vector<32x128xf32>
    %c0_6 = arith.constant 0 : index
    %c0_7 = arith.constant 0 : index
    %8 = vector.load %arg4[%c0_6, %c0_7] : memref<32x32xbf16, #tpu.memory_space<vmem>>, vector<32x32xbf16>
    %9 = arith.truncf %7 : vector<32x128xf32> to vector<32x128xbf16>
    %cst_8 = arith.constant dense<0.000000e+00> : vector<32x128xf32>
    %10 = tpu.matmul %8, %9, %cst_8 {dimension_numbers = #tpu.dot_dimension_numbers<[1], [0], [0], [1], [0, 0, 1, 1], [], []>} : vector<32x32xbf16>, vector<32x128xbf16>, vector<32x128xf32> -> vector<32x128xf32>
    %c0_9 = arith.constant 0 : index
    %c0_10 = arith.constant 0 : index
    %11 = vector.load %arg5[%c0_9, %c0_10] : memref<32x1xf32, #tpu.memory_space<vmem>>, vector<32x1xf32>
    %12 = vector.broadcast %11 : vector<32x1xf32> to vector<32x128xf32>
    %13 = arith.addf %10, %12 : vector<32x128xf32>
    %cst_11 = arith.constant 0.000000e+00 : f32
    %14 = vector.broadcast %cst_11 : f32 to vector<32x128xf32>
    %15 = arith.maximumf %13, %14 : vector<32x128xf32>
    %c0_12 = arith.constant 0 : index
    %c0_13 = arith.constant 0 : index
    %16 = vector.load %arg6[%c0_12, %c0_13] : memref<32x1xbf16, #tpu.memory_space<vmem>>, vector<32x1xbf16>
    %17 = arith.extf %16 : vector<32x1xbf16> to vector<32x1xf32>
    %18 = vector.broadcast %17 : vector<32x1xf32> to vector<32x128xf32>
    %19 = arith.mulf %15, %18 : vector<32x128xf32>
    %cst_14 = arith.constant dense<0.000000e+00> : vector<128xf32>
    %20 = vector.multi_reduction <add>, %19, %cst_14 [0] : vector<32x128xf32> to vector<128xf32>
    %21 = vector.shape_cast %20 : vector<128xf32> to vector<1x128xf32>
    %c0_15 = arith.constant 0 : index
    %c0_16 = arith.constant 0 : index
    %22 = memref.load %arg7[%c0_15, %c0_16] : memref<1x1xf32, #tpu.memory_space<smem>>
    %23 = vector.broadcast %22 : f32 to vector<1x128xf32>
    %24 = arith.addf %21, %23 : vector<1x128xf32>
    %c0_17 = arith.constant 0 : index
    %c0_18 = arith.constant 0 : index
    %25 = vector.load %arg8[%c0_17, %c0_18] : memref<1x128xf32, #tpu.memory_space<vmem>>, vector<1x128xf32>
    tpu.vector_store %arg8[%c0_17, %c0_18], %24 {strides = array<i32>} : memref<1x128xf32, #tpu.memory_space<vmem>>, vector<1x128xf32>,
    return
  }
  func.func @transform_0(%arg0: i32) -> (i32, i32) {
    %c0_i32 = arith.constant 0 : i32
    %c0_i32_0 = arith.constant 0 : i32
    return %arg0, %c0_i32 : i32, i32
  }
  func.func @transform_1(%arg0: i32) -> (i32, i32) {
    %c0_i32 = arith.constant 0 : i32
    %c0_i32_0 = arith.constant 0 : i32
    %c0_i32_1 = arith.constant 0 : i32
    return %c0_i32, %c0_i32_0 : i32, i32
  }
  func.func @transform_2(%arg0: i32) -> (i32, i32) {
    %c0_i32 = arith.constant 0 : i32
    %c0_i32_0 = arith.constant 0 : i32
    %c0_i32_1 = arith.constant 0 : i32
    return %c0_i32, %c0_i32_0 : i32, i32
  }
  func.func @transform_3(%arg0: i32) -> (i32, i32) {
    %c0_i32 = arith.constant 0 : i32
    %c0_i32_0 = arith.constant 0 : i32
    %c0_i32_1 = arith.constant 0 : i32
    return %c0_i32, %c0_i32_0 : i32, i32
  }
  func.func @transform_4(%arg0: i32) -> (i32, i32) {
    %c0_i32 = arith.constant 0 : i32
    %c0_i32_0 = arith.constant 0 : i32
    %c0_i32_1 = arith.constant 0 : i32
    return %c0_i32, %c0_i32_0 : i32, i32
  }
  func.func @transform_5(%arg0: i32) -> (i32, i32) {
    %c0_i32 = arith.constant 0 : i32
    %c0_i32_0 = arith.constant 0 : i32
    %c0_i32_1 = arith.constant 0 : i32
    return %c0_i32, %c0_i32_0 : i32, i32
  }
  func.func @transform_6(%arg0: i32) -> (i32, i32) {
    %c0_i32 = arith.constant 0 : i32
    %c0_i32_0 = arith.constant 0 : i32
    %c0_i32_1 = arith.constant 0 : i32
    return %c0_i32, %c0_i32_0 : i32, i32
  }
  func.func @transform_7(%arg0: i32) -> (i32, i32) {
    %c0_i32 = arith.constant 0 : i32
    %c0_i32_0 = arith.constant 0 : i32
    return %c0_i32, %arg0 : i32, i32
  }
}

module attributes {stable_mosaic.version = 11 : i64} {
  func.func @critic_kernel(%arg0: i32, %arg1: memref<128x16xbf16, #tpu.memory_space<vmem>>, %arg2: memref<32x16xbf16, #tpu.memory_space<vmem>>, %arg3: memref<32x1xf32, #tpu.memory_space<vmem>>, %arg4: memref<32x32xbf16, #tpu.memory_space<vmem>>, %arg5: memref<32x1xf32, #tpu.memory_space<vmem>>, %arg6: memref<32x1xbf16, #tpu.memory_space<vmem>>, %arg7: memref<1x1xf32, #tpu.memory_space<smem>>, %arg8: memref<1x128xf32, #tpu.memory_space<vmem>>) attributes {dimension_semantics = [#tpu.dimension_semantics<parallel>], iteration_bounds = array<i64: 1>, scalar_prefetch = 0 : i64, scratch_operands = 0 : i64, tpu.core_type = #tpu.core_type<tc>, window_params = [{transform_indices = @transform_0, window_bounds = array<i64: 128, 16>}, {pipeline_mode = #tpu.pipeline_mode<synchronous>, transform_indices = @transform_1, window_bounds = array<i64: 32, 16>}, {pipeline_mode = #tpu.pipeline_mode<synchronous>, transform_indices = @transform_2, window_bounds = array<i64: 32, 1>}, {pipeline_mode = #tpu.pipeline_mode<synchronous>, transform_indices = @transform_3, window_bounds = array<i64: 32, 32>}, {pipeline_mode = #tpu.pipeline_mode<synchronous>, transform_indices = @transform_4, window_bounds = array<i64: 32, 1>}, {pipeline_mode = #tpu.pipeline_mode<synchronous>, transform_indices = @transform_5, window_bounds = array<i64: 32, 1>}, {transform_indices = @transform_6, window_bounds = array<i64: 1, 1>}, {transform_indices = @transform_7, window_bounds = array<i64: 1, 128>}]} {
    %c0 = arith.constant 0 : index
    %c0_0 = arith.constant 0 : index
    %0 = vector.load %arg1[%c0, %c0_0] : memref<128x16xbf16, #tpu.memory_space<vmem>>, vector<128x16xbf16>
    %c0_1 = arith.constant 0 : index
    %c0_2 = arith.constant 0 : index
    %1 = vector.load %arg2[%c0_1, %c0_2] : memref<32x16xbf16, #tpu.memory_space<vmem>>, vector<32x16xbf16>
    %cst = arith.constant dense<0.000000e+00> : vector<32x128xf32>
    %2 = tpu.matmul %1, %0, %cst {dimension_numbers = #tpu.dot_dimension_numbers<[1], [1], [0], [0], [0, 0, 1, 0], [], []>} : vector<32x16xbf16>, vector<128x16xbf16>, vector<32x128xf32> -> vector<32x128xf32>
    %c0_3 = arith.constant 0 : index
    %c0_4 = arith.constant 0 : index
    %3 = vector.load %arg3[%c0_3, %c0_4] : memref<32x1xf32, #tpu.memory_space<vmem>>, vector<32x1xf32>
    %4 = vector.broadcast %3 : vector<32x1xf32> to vector<32x128xf32>
    %5 = arith.addf %2, %4 : vector<32x128xf32>
    %cst_5 = arith.constant 0.000000e+00 : f32
    %6 = vector.broadcast %cst_5 : f32 to vector<32x128xf32>
    %7 = arith.maximumf %5, %6 : vector<32x128xf32>
    %c0_6 = arith.constant 0 : index
    %c0_7 = arith.constant 0 : index
    %8 = vector.load %arg4[%c0_6, %c0_7] : memref<32x32xbf16, #tpu.memory_space<vmem>>, vector<32x32xbf16>
    %9 = arith.truncf %7 : vector<32x128xf32> to vector<32x128xbf16>
    %cst_8 = arith.constant dense<0.000000e+00> : vector<32x128xf32>
    %10 = tpu.matmul %8, %9, %cst_8 {dimension_numbers = #tpu.dot_dimension_numbers<[1], [0], [0], [1], [0, 0, 1, 1], [], []>} : vector<32x32xbf16>, vector<32x128xbf16>, vector<32x128xf32> -> vector<32x128xf32>
    %c0_9 = arith.constant 0 : index
    %c0_10 = arith.constant 0 : index
    %11 = vector.load %arg5[%c0_9, %c0_10] : memref<32x1xf32, #tpu.memory_space<vmem>>, vector<32x1xf32>
    %12 = vector.broadcast %11 : vector<32x1xf32> to vector<32x128xf32>
    %13 = arith.addf %10, %12 : vector<32x128xf32>
    %cst_11 = arith.constant 0.000000e+00 : f32
    %14 = vector.broadcast %cst_11 : f32 to vector<32x128xf32>
    %15 = arith.maximumf %13, %14 : vector<32x128xf32>
    %c0_12 = arith.constant 0 : index
    %c0_13 = arith.constant 0 : index
    %16 = vector.load %arg6[%c0_12, %c0_13] : memref<32x1xbf16, #tpu.memory_space<vmem>>, vector<32x1xbf16>
    %17 = arith.extf %16 : vector<32x1xbf16> to vector<32x1xf32>
    %18 = vector.broadcast %17 : vector<32x1xf32> to vector<32x128xf32>
    %19 = arith.mulf %15, %18 : vector<32x128xf32>
    %cst_14 = arith.constant dense<0.000000e+00> : vector<128xf32>
    %20 = vector.multi_reduction <add>, %19, %cst_14 [0] : vector<32x128xf32> to vector<128xf32>
    %21 = vector.shape_cast %20 : vector<128xf32> to vector<1x128xf32>
    %c0_15 = arith.constant 0 : index
    %c0_16 = arith.constant 0 : index
    %22 = memref.load %arg7[%c0_15, %c0_16] : memref<1x1xf32, #tpu.memory_space<smem>>
    %23 = vector.broadcast %22 : f32 to vector<1x128xf32>
    %24 = arith.addf %21, %23 : vector<1x128xf32>
    %c0_17 = arith.constant 0 : index
    %c0_18 = arith.constant 0 : index
    %25 = vector.load %arg8[%c0_17, %c0_18] : memref<1x128xf32, #tpu.memory_space<vmem>>, vector<1x128xf32>
    tpu.vector_store %arg8[%c0_17, %c0_18], %24 {strides = array<i32>} : memref<1x128xf32, #tpu.memory_space<vmem>>, vector<1x128xf32>,
    return
  }
  func.func @transform_0(%arg0: i32) -> (i32, i32) {
    %c0_i32 = arith.constant 0 : i32
    %c0_i32_0 = arith.constant 0 : i32
    return %arg0, %c0_i32 : i32, i32
  }
  func.func @transform_1(%arg0: i32) -> (i32, i32) {
    %c0_i32 = arith.constant 0 : i32
    %c0_i32_0 = arith.constant 0 : i32
    %c0_i32_1 = arith.constant 0 : i32
    return %c0_i32, %c0_i32_0 : i32, i32
  }
  func.func @transform_2(%arg0: i32) -> (i32, i32) {
    %c0_i32 = arith.constant 0 : i32
    %c0_i32_0 = arith.constant 0 : i32
    %c0_i32_1 = arith.constant 0 : i32
    return %c0_i32, %c0_i32_0 : i32, i32
  }
  func.func @transform_3(%arg0: i32) -> (i32, i32) {
    %c0_i32 = arith.constant 0 : i32
    %c0_i32_0 = arith.constant 0 : i32
    %c0_i32_1 = arith.constant 0 : i32
    return %c0_i32, %c0_i32_0 : i32, i32
  }
  func.func @transform_4(%arg0: i32) -> (i32, i32) {
    %c0_i32 = arith.constant 0 : i32
    %c0_i32_0 = arith.constant 0 : i32
    %c0_i32_1 = arith.constant 0 : i32
    return %c0_i32, %c0_i32_0 : i32, i32
  }
  func.func @transform_5(%arg0: i32) -> (i32, i32) {
    %c0_i32 = arith.constant 0 : i32
    %c0_i32_0 = arith.constant 0 : i32
    %c0_i32_1 = arith.constant 0 : i32
    return %c0_i32, %c0_i32_0 : i32, i32
  }
  func.func @transform_6(%arg0: i32) -> (i32, i32) {
    %c0_i32 = arith.constant 0 : i32
    %c0_i32_0 = arith.constant 0 : i32
    %c0_i32_1 = arith.constant 0 : i32
    return %c0_i32, %c0_i32_0 : i32, i32
  }
  func.func @transform_7(%arg0: i32) -> (i32, i32) {
    %c0_i32 = arith.constant 0 : i32
    %c0_i32_0 = arith.constant 0 : i32
    return %c0_i32, %arg0 : i32, i32
  }
}

</mosaic_0001>

<llo_original>
// kernel: _critic_forward_impl.1
$region0: #{_critic_forward_impl.1}
  #allocation0 [shape = 'u32[]', space=smem, size = 0x4, offset = 0x4, fixed_abs, tag = 'smem constant byte address 0x4 - core index']
  #allocation1 [shape = 'u32[72,128]{1,0:T(1,128)}', space=vmem, size = 0x9000, scoped, tag = 'internal scratch']
  #allocation2 [shape = 'f32[1,1]{1,0:T(1,128)S(6)}', space=smem, size = 0x200, scoped, tag = 'scoped memory for _critic_forward_impl.1']
  %s0 = inlined_call_operand.vmem [shape: bf16[128,16], index: 0, kind: input, shape index: {}]
  %s1 = inlined_call_operand.vmem [shape: bf16[32,16], index: 1, kind: input, shape index: {}]
  %s2 = inlined_call_operand.vmem [shape: f32[32,1], index: 2, kind: input, shape index: {}]
  %s3 = inlined_call_operand.vmem [shape: bf16[32,32], index: 3, kind: input, shape index: {}]
  %s4 = inlined_call_operand.vmem [shape: f32[32,1], index: 4, kind: input, shape index: {}]
  %s5 = inlined_call_operand.vmem [shape: bf16[32,1], index: 5, kind: input, shape index: {}]
  %s6 = inlined_call_operand.<no memory space> [shape: f32[1,1], index: 6, kind: input, shape index: {}]
  %s7 = inlined_call_operand.vmem [shape: f32[1,128], index: 7, kind: output, shape index: {}]
  %s8 = sld [smem:[#allocation0]]
  $region38: #{_critic_forward_impl.1} parent=0
    _
  %s10 = ssub.s32 1, %s8
  %s11 = scalar_select 0, %s10, %s8
  %12 = sst [smem:[#allocation2]] %s6
  // Predicated region
  $region2: #{_critic_forward_impl.1} parent=0 // pred_check
    _
  $region3: #{_critic_forward_impl.1} parent=0 // pred_check_branch
    %14 = sbr.rel (0) target = $region5
  $region4: #{_critic_forward_impl.1} parent=0 // pred_region
    _
  $region5: #{_critic_forward_impl.1} parent=0 // pred_fallthru
    _
  // Predicated region
  $region6: #{_critic_forward_impl.1} parent=0 // pred_check
    _
  $region7: #{_critic_forward_impl.1} parent=0 // pred_check_branch
    %16 = sbr.rel (0) target = $region9
  $region8: #{_critic_forward_impl.1} parent=0 // pred_region
    _
  $region9: #{_critic_forward_impl.1} parent=0 // pred_fallthru
    _
  // Predicated region
  $region10: #{_critic_forward_impl.1} parent=0 // pred_check
    _
  $region11: #{_critic_forward_impl.1} parent=0 // pred_check_branch
    %18 = sbr.rel (0) target = $region13
  $region12: #{_critic_forward_impl.1} parent=0 // pred_region
    _
  $region13: #{_critic_forward_impl.1} parent=0 // pred_fallthru
    _
  // Predicated region
  $region14: #{_critic_forward_impl.1} parent=0 // pred_check
    _
  $region15: #{_critic_forward_impl.1} parent=0 // pred_check_branch
    %20 = sbr.rel (0) target = $region17
  $region16: #{_critic_forward_impl.1} parent=0 // pred_region
    _
  $region17: #{_critic_forward_impl.1} parent=0 // pred_fallthru
    _
  // Predicated region
  $region18: #{_critic_forward_impl.1} parent=0 // pred_check
    _
  $region19: #{_critic_forward_impl.1} parent=0 // pred_check_branch
    %22 = sbr.rel (0) target = $region21
  $region20: #{_critic_forward_impl.1} parent=0 // pred_region
    _
  $region21: #{_critic_forward_impl.1} parent=0 // pred_fallthru
    _
  // Predicated region
  $region22: #{_critic_forward_impl.1} parent=0 // pred_check
    _
  $region23: #{_critic_forward_impl.1} parent=0 // pred_check_branch
    %24 = sbr.rel (0) target = $region25
  $region24: #{_critic_forward_impl.1} parent=0 // pred_region
    _
  $region25: #{_critic_forward_impl.1} parent=0 // pred_fallthru
    _
  // Predicated region
  $region26: #{_critic_forward_impl.1} parent=0 // pred_check
    _
  $region27: #{_critic_forward_impl.1} parent=0 // pred_check_branch
    %26 = sbr.rel (0) target = $region29
  $region28: #{_critic_forward_impl.1} parent=0 // pred_region
    _
  $region29: #{_critic_forward_impl.1} parent=0 // pred_fallthru
    _
  %v28 = vld [vmem:[%s0] sm:$0xf]
  %v29 = vld [vmem:[%s0 + $0x4] sm:$0xf]
  %v30 = vld [vmem:[%s0 + $0x8] sm:$0xf]
  %v31 = vld [vmem:[%s0 + $0xc] sm:$0xf]
  %v32 = vld [vmem:[%s0 + $0x10] sm:$0xf]
  %v33 = vld [vmem:[%s0 + $0x14] sm:$0xf]
  %v34 = vld [vmem:[%s0 + $0x18] sm:$0xf]
  %v35 = vld [vmem:[%s0 + $0x1c] sm:$0xf]
  %v36 = vld [vmem:[%s0 + $0x20] sm:$0xf]
  %v37 = vld [vmem:[%s0 + $0x24] sm:$0xf]
  %v38 = vld [vmem:[%s0 + $0x28] sm:$0xf]
  %v39 = vld [vmem:[%s0 + $0x2c] sm:$0xf]
  %v40 = vld [vmem:[%s0 + $0x30] sm:$0xf]
  %v41 = vld [vmem:[%s0 + $0x34] sm:$0xf]
  %v42 = vld [vmem:[%s0 + $0x38] sm:$0xf]
  %v43 = vld [vmem:[%s0 + $0x3c] sm:$0xf]
  %v44 = vld [vmem:[%s1] sm:$0xf]
  %v45 = vld [vmem:[%s1 + $0x4] sm:$0xf]
  %v46 = vld [vmem:[%s1 + $0x8] sm:$0xf]
  %v47 = vld [vmem:[%s1 + $0xc] sm:$0xf]
  %v48 = vld [vmem:[%s2] sm:$0xff]
  %v49 = vld [vmem:[%s2 + $0x8] sm:$0xff]
  %v50 = vld [vmem:[%s2 + $0x10] sm:$0xff]
  %v51 = vld [vmem:[%s2 + $0x18] sm:$0xff]
  %53 = vset.pattern.permute.xlu0 0
  %54 = vperm.xlu0 %53, %v48
  %v55 = vpop.permute.xlu0 %54
  %58 = vset.pattern.permute.xlu0 0
  %59 = vperm.xlu0 %58, %v49
  %v60 = vpop.permute.xlu0 %59
  %63 = vset.pattern.permute.xlu0 0
  %64 = vperm.xlu0 %63, %v50
  %v65 = vpop.permute.xlu0 %64
  %68 = vset.pattern.permute.xlu0 0
  %69 = vperm.xlu0 %68, %v51
  %v70 = vpop.permute.xlu0 %69
  %v76 = vunpack.c.l.b16 %v44
  %v77 = vunpack.c.l.b16 %v45
  %v78 = vunpack.c.l.b16 %v46
  %v79 = vunpack.c.l.b16 %v47
  %v80 = vpack.c.b16 %v77, %v76
  %v81 = vpack.c.b16 %v79, %v78
  %v98 = vunpack.c.l.b16 %v28
  %v99 = vunpack.c.l.b16 %v29
  %v100 = vunpack.c.l.b16 %v30
  %v101 = vunpack.c.l.b16 %v31
  %v102 = vunpack.c.l.b16 %v32
  %v103 = vunpack.c.l.b16 %v33
  %v104 = vunpack.c.l.b16 %v34
  %v105 = vunpack.c.l.b16 %v35
  %v106 = vunpack.c.l.b16 %v36
  %v107 = vunpack.c.l.b16 %v37
  %v108 = vunpack.c.l.b16 %v38
  %v109 = vunpack.c.l.b16 %v39
  %v110 = vunpack.c.l.b16 %v40
  %v111 = vunpack.c.l.b16 %v41
  %v112 = vunpack.c.l.b16 %v42
  %v113 = vunpack.c.l.b16 %v43
  %v114 = vpack.c.b16 %v99, %v98
  %v115 = vpack.c.b16 %v101, %v100
  %v116 = vpack.c.b16 %v103, %v102
  %v117 = vpack.c.b16 %v105, %v104
  %v118 = vpack.c.b16 %v107, %v106
  %v119 = vpack.c.b16 %v109, %v108
  %v120 = vpack.c.b16 %v111, %v110
  %v121 = vpack.c.b16 %v113, %v112
  %vm122 = vcmask 130048
  %v124 = vsel %vm122, %v80, 0
  %v127 = vsel %vm122, %v81, 0
  %v130 = vsel %vm122, %v114, 0
  %v133 = vsel %vm122, %v115, 0
  %v136 = vsel %vm122, %v116, 0
  %v139 = vsel %vm122, %v117, 0
  %v142 = vsel %vm122, %v118, 0
  %v145 = vsel %vm122, %v119, 0
  %v148 = vsel %vm122, %v120, 0
  %v151 = vsel %vm122, %v121, 0
  %153 = vmatpush.bf16.xpose.msra.mxu0 %v151
  %154 = vmatpush.bf16.xpose.msra.mxu0 %v148
  %155 = vmatpush.bf16.xpose.msra.mxu0 %v145
  %156 = vmatpush.bf16.xpose.msra.mxu0 %v142
  %157 = vmatpush.bf16.xpose.msra.mxu0 %v139
  %158 = vmatpush.bf16.xpose.msra.mxu0 %v136
  %159 = vmatpush.bf16.xpose.msra.mxu0 %v133
  %160 = vmatpush.bf16.xpose.msra.mxu0 %v130
  %161 = vmatmul.bf16.gmra.mxu0 %v124
  %v162 = vpop.f32.mrf.mxu0
  %v163 = vadd.f32 %v55, %v162
  %v164 = vpop.f32.mrf.mxu0
  %v165 = vadd.f32 %v60, %v164
  %166 = vmatmul.bf16.gmra.mxu0 %v127
  %v167 = vpop.f32.mrf.mxu0
  %v168 = vadd.f32 %v65, %v167
  %v169 = vpop.f32.mrf.mxu0
  %v170 = vadd.f32 %v70, %v169
  %171 = vdwg.mxu0
  %v172 = vmax.f32 %v163, 0.0
  %v173 = vmax.f32 %v165, 0.0
  %v174 = vmax.f32 %v168, 0.0
  %v175 = vmax.f32 %v170, 0.0
  %v176 = vld [vmem:[%s3] sm:$0xf]
  %v177 = vld [vmem:[%s3 + $0x4] sm:$0xf]
  %v178 = vld [vmem:[%s3 + $0x8] sm:$0xf]
  %v179 = vld [vmem:[%s3 + $0xc] sm:$0xf]
  %v180 = vpack.c.bf16 %v173, %v172
  %v181 = vpack.c.bf16 %v175, %v174
  %v182 = vld [vmem:[%s4] sm:$0xff]
  %v183 = vld [vmem:[%s4 + $0x8] sm:$0xff]
  %v184 = vld [vmem:[%s4 + $0x10] sm:$0xff]
  %v185 = vld [vmem:[%s4 + $0x18] sm:$0xff]
  %187 = vset.pattern.permute.xlu0 0
  %188 = vperm.xlu0 %187, %v182
  %v189 = vpop.permute.xlu0 %188
  %192 = vset.pattern.permute.xlu0 0
  %193 = vperm.xlu0 %192, %v183
  %v194 = vpop.permute.xlu0 %193
  %197 = vset.pattern.permute.xlu0 0
  %198 = vperm.xlu0 %197, %v184
  %v199 = vpop.permute.xlu0 %198
  %202 = vset.pattern.permute.xlu0 0
  %203 = vperm.xlu0 %202, %v185
  %v204 = vpop.permute.xlu0 %203
  %v210 = vunpack.c.l.b16 %v176
  %v211 = vunpack.c.l.b16 %v177
  %v212 = vunpack.c.l.b16 %v178
  %v213 = vunpack.c.l.b16 %v179
  %v214 = vpack.c.b16 %v211, %v210
  %v215 = vpack.c.b16 %v213, %v212
  %vm216 = vcmask 261120
  %v218 = vsel %vm216, %v214, 0
  %v221 = vsel %vm216, %v215, 0
  %223 = vmatpush.bf16.msra.mxu0 0
  %224 = vmatpush.bf16.msra.mxu0 0
  %225 = vmatpush.bf16.msra.mxu0 0
  %226 = vmatpush.bf16.msra.mxu0 0
  %227 = vmatpush.bf16.msra.mxu0 0
  %228 = vmatpush.bf16.msra.mxu0 0
  %229 = vmatpush.bf16.msra.mxu0 %v181
  %230 = vmatpush.bf16.msra.mxu0 %v180
  %231 = vmatmul.bf16.gmra.mxu0 %v218
  %v232 = vpop.f32.mrf.mxu0
  %v233 = vadd.f32 %v189, %v232
  %v234 = vpop.f32.mrf.mxu0
  %v235 = vadd.f32 %v194, %v234
  %236 = vmatmul.bf16.gmra.mxu0 %v221
  %v237 = vpop.f32.mrf.mxu0
  %v238 = vadd.f32 %v199, %v237
  %v239 = vpop.f32.mrf.mxu0
  %v240 = vadd.f32 %v204, %v239
  %241 = vdwg.mxu0
  %v242 = vmax.f32 %v233, 0.0
  %v243 = vmax.f32 %v235, 0.0
  %v244 = vmax.f32 %v238, 0.0
  %v245 = vmax.f32 %v240, 0.0
  %v246 = vld [vmem:[%s5] sm:$0xf]
  %v247 = vld [vmem:[%s5 + $0x4] sm:$0xf]
  %v248 = vld [vmem:[%s5 + $0x8] sm:$0xf]
  %v249 = vld [vmem:[%s5 + $0xc] sm:$0xf]
  %v250 = vunpack.c.l.bf16 %v246
  %v251 = vunpack.c.l.bf16 %v247
  %v252 = vunpack.c.l.bf16 %v248
  %v253 = vunpack.c.l.bf16 %v249
  %255 = vset.pattern.permute.xlu0 0
  %256 = vperm.xlu0 %255, %v250
  %v257 = vpop.permute.xlu0 %256
  %260 = vset.pattern.permute.xlu0 0
  %261 = vperm.xlu0 %260, %v251
  %v262 = vpop.permute.xlu0 %261
  %265 = vset.pattern.permute.xlu0 0
  %266 = vperm.xlu0 %265, %v252
  %v267 = vpop.permute.xlu0 %266
  %270 = vset.pattern.permute.xlu0 0
  %271 = vperm.xlu0 %270, %v253
  %v272 = vpop.permute.xlu0 %271
  %v274 = vmul.f32 %v242, %v257
  %v275 = vmul.f32 %v243, %v262
  %v276 = vmul.f32 %v244, %v267
  %v277 = vmul.f32 %v245, %v272
  %v278 = vadd.f32 %v274, %v275
  %v279 = vadd.f32 %v278, %v276
  %v280 = vadd.f32 %v279, %v277
  %v281 = vrot.slane %v280, 4
  %v282 = vadd.f32 %v280, %v281
  %v283 = vrot.slane %v282, 2
  %v284 = vadd.f32 %v282, %v283
  %v285 = vrot.slane %v284, 1
  %v286 = vadd.f32 %v284, %v285
  %s287 = sld [smem:[#allocation2]]
  %v288 = vstv %s287
  %v289 = vadd.f32 %v286, %v288
  %290 = vst [vmem:[%s7] sm:$0x1] %v289
  // Predicated region
  $region30: #{_critic_forward_impl.1} parent=0 // pred_check
    _
  $region31: #{_critic_forward_impl.1} parent=0 // pred_check_branch
    %292 = sbr.rel (0) target = $region33
  $region32: #{_critic_forward_impl.1} parent=0 // pred_region
    _
  $region33: #{_critic_forward_impl.1} parent=0 // pred_fallthru
    _
  // Predicated region
  $region34: #{_critic_forward_impl.1} parent=0 // pred_check
    _
  $region35: #{_critic_forward_impl.1} parent=0 // pred_check_branch
    %294 = sbr.rel (0) target = $region37
  $region36: #{_critic_forward_impl.1} parent=0 // pred_region
    _
  $region37: #{_critic_forward_impl.1} parent=0 // pred_fallthru
    _

// kernel: _critic_forward_impl.1
$region0: #{_critic_forward_impl.1}
  #allocation0 [shape = 'u32[]', space=smem, size = 0x4, offset = 0x4, fixed_abs, tag = 'smem constant byte address 0x4 - core index']
  #allocation1 [shape = 'u32[72,128]{1,0:T(1,128)}', space=vmem, size = 0x9000, scoped, tag = 'internal scratch']
  #allocation2 [shape = 'f32[1,1]{1,0:T(1,128)S(6)}', space=smem, size = 0x200, scoped, tag = 'scoped memory for _critic_forward_impl.1']
  %s0 = inlined_call_operand.vmem [shape: bf16[128,16], index: 0, kind: input, shape index: {}]
  %s1 = inlined_call_operand.vmem [shape: bf16[32,16], index: 1, kind: input, shape index: {}]
  %s2 = inlined_call_operand.vmem [shape: f32[32,1], index: 2, kind: input, shape index: {}]
  %s3 = inlined_call_operand.vmem [shape: bf16[32,32], index: 3, kind: input, shape index: {}]
  %s4 = inlined_call_operand.vmem [shape: f32[32,1], index: 4, kind: input, shape index: {}]
  %s5 = inlined_call_operand.vmem [shape: bf16[32,1], index: 5, kind: input, shape index: {}]
  %s6 = inlined_call_operand.<no memory space> [shape: f32[1,1], index: 6, kind: input, shape index: {}]
  %s7 = inlined_call_operand.vmem [shape: f32[1,128], index: 7, kind: output, shape index: {}]
  %s8 = sld [smem:[#allocation0]]
  $region38: #{_critic_forward_impl.1} parent=0
    _
  %s10 = ssub.s32 1, %s8
  %s11 = scalar_select 0, %s10, %s8
  %12 = sst [smem:[#allocation2]] %s6
  // Predicated region
  $region2: #{_critic_forward_impl.1} parent=0 // pred_check
    _
  $region3: #{_critic_forward_impl.1} parent=0 // pred_check_branch
    %14 = sbr.rel (0) target = $region5
  $region4: #{_critic_forward_impl.1} parent=0 // pred_region
    _
  $region5: #{_critic_forward_impl.1} parent=0 // pred_fallthru
    _
  // Predicated region
  $region6: #{_critic_forward_impl.1} parent=0 // pred_check
    _
  $region7: #{_critic_forward_impl.1} parent=0 // pred_check_branch
    %16 = sbr.rel (0) target = $region9
  $region8: #{_critic_forward_impl.1} parent=0 // pred_region
    _
  $region9: #{_critic_forward_impl.1} parent=0 // pred_fallthru
    _
  // Predicated region
  $region10: #{_critic_forward_impl.1} parent=0 // pred_check
    _
  $region11: #{_critic_forward_impl.1} parent=0 // pred_check_branch
    %18 = sbr.rel (0) target = $region13
  $region12: #{_critic_forward_impl.1} parent=0 // pred_region
    _
  $region13: #{_critic_forward_impl.1} parent=0 // pred_fallthru
    _
  // Predicated region
  $region14: #{_critic_forward_impl.1} parent=0 // pred_check
    _
  $region15: #{_critic_forward_impl.1} parent=0 // pred_check_branch
    %20 = sbr.rel (0) target = $region17
  $region16: #{_critic_forward_impl.1} parent=0 // pred_region
    _
  $region17: #{_critic_forward_impl.1} parent=0 // pred_fallthru
    _
  // Predicated region
  $region18: #{_critic_forward_impl.1} parent=0 // pred_check
    _
  $region19: #{_critic_forward_impl.1} parent=0 // pred_check_branch
    %22 = sbr.rel (0) target = $region21
  $region20: #{_critic_forward_impl.1} parent=0 // pred_region
    _
  $region21: #{_critic_forward_impl.1} parent=0 // pred_fallthru
    _
  // Predicated region
  $region22: #{_critic_forward_impl.1} parent=0 // pred_check
    _
  $region23: #{_critic_forward_impl.1} parent=0 // pred_check_branch
    %24 = sbr.rel (0) target = $region25
  $region24: #{_critic_forward_impl.1} parent=0 // pred_region
    _
  $region25: #{_critic_forward_impl.1} parent=0 // pred_fallthru
    _
  // Predicated region
  $region26: #{_critic_forward_impl.1} parent=0 // pred_check
    _
  $region27: #{_critic_forward_impl.1} parent=0 // pred_check_branch
    %26 = sbr.rel (0) target = $region29
  $region28: #{_critic_forward_impl.1} parent=0 // pred_region
    _
  $region29: #{_critic_forward_impl.1} parent=0 // pred_fallthru
    _
  %v28 = vld [vmem:[%s0] sm:$0xf]
  %v29 = vld [vmem:[%s0 + $0x4] sm:$0xf]
  %v30 = vld [vmem:[%s0 + $0x8] sm:$0xf]
  %v31 = vld [vmem:[%s0 + $0xc] sm:$0xf]
  %v32 = vld [vmem:[%s0 + $0x10] sm:$0xf]
  %v33 = vld [vmem:[%s0 + $0x14] sm:$0xf]
  %v34 = vld [vmem:[%s0 + $0x18] sm:$0xf]
  %v35 = vld [vmem:[%s0 + $0x1c] sm:$0xf]
  %v36 = vld [vmem:[%s0 + $0x20] sm:$0xf]
  %v37 = vld [vmem:[%s0 + $0x24] sm:$0xf]
  %v38 = vld [vmem:[%s0 + $0x28] sm:$0xf]
  %v39 = vld [vmem:[%s0 + $0x2c] sm:$0xf]
  %v40 = vld [vmem:[%s0 + $0x30] sm:$0xf]
  %v41 = vld [vmem:[%s0 + $0x34] sm:$0xf]
  %v42 = vld [vmem:[%s0 + $0x38] sm:$0xf]
  %v43 = vld [vmem:[%s0 + $0x3c] sm:$0xf]
  %v44 = vld [vmem:[%s1] sm:$0xf]
  %v45 = vld [vmem:[%s1 + $0x4] sm:$0xf]
  %v46 = vld [vmem:[%s1 + $0x8] sm:$0xf]
  %v47 = vld [vmem:[%s1 + $0xc] sm:$0xf]
  %v48 = vld [vmem:[%s2] sm:$0xff]
  %v49 = vld [vmem:[%s2 + $0x8] sm:$0xff]
  %v50 = vld [vmem:[%s2 + $0x10] sm:$0xff]
  %v51 = vld [vmem:[%s2 + $0x18] sm:$0xff]
  %53 = vset.pattern.permute.xlu0 0
  %54 = vperm.xlu0 %53, %v48
  %v55 = vpop.permute.xlu0 %54
  %58 = vset.pattern.permute.xlu0 0
  %59 = vperm.xlu0 %58, %v49
  %v60 = vpop.permute.xlu0 %59
  %63 = vset.pattern.permute.xlu0 0
  %64 = vperm.xlu0 %63, %v50
  %v65 = vpop.permute.xlu0 %64
  %68 = vset.pattern.permute.xlu0 0
  %69 = vperm.xlu0 %68, %v51
  %v70 = vpop.permute.xlu0 %69
  %v76 = vunpack.c.l.b16 %v44
  %v77 = vunpack.c.l.b16 %v45
  %v78 = vunpack.c.l.b16 %v46
  %v79 = vunpack.c.l.b16 %v47
  %v80 = vpack.c.b16 %v77, %v76
  %v81 = vpack.c.b16 %v79, %v78
  %v98 = vunpack.c.l.b16 %v28
  %v99 = vunpack.c.l.b16 %v29
  %v100 = vunpack.c.l.b16 %v30
  %v101 = vunpack.c.l.b16 %v31
  %v102 = vunpack.c.l.b16 %v32
  %v103 = vunpack.c.l.b16 %v33
  %v104 = vunpack.c.l.b16 %v34
  %v105 = vunpack.c.l.b16 %v35
  %v106 = vunpack.c.l.b16 %v36
  %v107 = vunpack.c.l.b16 %v37
  %v108 = vunpack.c.l.b16 %v38
  %v109 = vunpack.c.l.b16 %v39
  %v110 = vunpack.c.l.b16 %v40
  %v111 = vunpack.c.l.b16 %v41
  %v112 = vunpack.c.l.b16 %v42
  %v113 = vunpack.c.l.b16 %v43
  %v114 = vpack.c.b16 %v99, %v98
  %v115 = vpack.c.b16 %v101, %v100
  %v116 = vpack.c.b16 %v103, %v102
  %v117 = vpack.c.b16 %v105, %v104
  %v118 = vpack.c.b16 %v107, %v106
  %v119 = vpack.c.b16 %v109, %v108
  %v120 = vpack.c.b16 %v111, %v110
  %v121 = vpack.c.b16 %v113, %v112
  %vm122 = vcmask 130048
  %v124 = vsel %vm122, %v80, 0
  %v127 = vsel %vm122, %v81, 0
  %v130 = vsel %vm122, %v114, 0
  %v133 = vsel %vm122, %v115, 0
  %v136 = vsel %vm122, %v116, 0
  %v139 = vsel %vm122, %v117, 0
  %v142 = vsel %vm122, %v118, 0
  %v145 = vsel %vm122, %v119, 0
  %v148 = vsel %vm122, %v120, 0
  %v151 = vsel %vm122, %v121, 0
  %153 = vmatpush.bf16.xpose.msra.mxu0 %v151
  %154 = vmatpush.bf16.xpose.msra.mxu0 %v148
  %155 = vmatpush.bf16.xpose.msra.mxu0 %v145
  %156 = vmatpush.bf16.xpose.msra.mxu0 %v142
  %157 = vmatpush.bf16.xpose.msra.mxu0 %v139
  %158 = vmatpush.bf16.xpose.msra.mxu0 %v136
  %159 = vmatpush.bf16.xpose.msra.mxu0 %v133
  %160 = vmatpush.bf16.xpose.msra.mxu0 %v130
  %161 = vmatmul.bf16.gmra.mxu0 %v124
  %v162 = vpop.f32.mrf.mxu0
  %v163 = vadd.f32 %v55, %v162
  %v164 = vpop.f32.mrf.mxu0
  %v165 = vadd.f32 %v60, %v164
  %166 = vmatmul.bf16.gmra.mxu0 %v127
  %v167 = vpop.f32.mrf.mxu0
  %v168 = vadd.f32 %v65, %v167
  %v169 = vpop.f32.mrf.mxu0
  %v170 = vadd.f32 %v70, %v169
  %171 = vdwg.mxu0
  %v172 = vmax.f32 %v163, 0.0
  %v173 = vmax.f32 %v165, 0.0
  %v174 = vmax.f32 %v168, 0.0
  %v175 = vmax.f32 %v170, 0.0
  %v176 = vld [vmem:[%s3] sm:$0xf]
  %v177 = vld [vmem:[%s3 + $0x4] sm:$0xf]
  %v178 = vld [vmem:[%s3 + $0x8] sm:$0xf]
  %v179 = vld [vmem:[%s3 + $0xc] sm:$0xf]
  %v180 = vpack.c.bf16 %v173, %v172
  %v181 = vpack.c.bf16 %v175, %v174
  %v182 = vld [vmem:[%s4] sm:$0xff]
  %v183 = vld [vmem:[%s4 + $0x8] sm:$0xff]
  %v184 = vld [vmem:[%s4 + $0x10] sm:$0xff]
  %v185 = vld [vmem:[%s4 + $0x18] sm:$0xff]
  %187 = vset.pattern.permute.xlu0 0
  %188 = vperm.xlu0 %187, %v182
  %v189 = vpop.permute.xlu0 %188
  %192 = vset.pattern.permute.xlu0 0
  %193 = vperm.xlu0 %192, %v183
  %v194 = vpop.permute.xlu0 %193
  %197 = vset.pattern.permute.xlu0 0
  %198 = vperm.xlu0 %197, %v184
  %v199 = vpop.permute.xlu0 %198
  %202 = vset.pattern.permute.xlu0 0
  %203 = vperm.xlu0 %202, %v185
  %v204 = vpop.permute.xlu0 %203
  %v210 = vunpack.c.l.b16 %v176
  %v211 = vunpack.c.l.b16 %v177
  %v212 = vunpack.c.l.b16 %v178
  %v213 = vunpack.c.l.b16 %v179
  %v214 = vpack.c.b16 %v211, %v210
  %v215 = vpack.c.b16 %v213, %v212
  %vm216 = vcmask 261120
  %v218 = vsel %vm216, %v214, 0
  %v221 = vsel %vm216, %v215, 0
  %223 = vmatpush.bf16.msra.mxu0 0
  %224 = vmatpush.bf16.msra.mxu0 0
  %225 = vmatpush.bf16.msra.mxu0 0
  %226 = vmatpush.bf16.msra.mxu0 0
  %227 = vmatpush.bf16.msra.mxu0 0
  %228 = vmatpush.bf16.msra.mxu0 0
  %229 = vmatpush.bf16.msra.mxu0 %v181
  %230 = vmatpush.bf16.msra.mxu0 %v180
  %231 = vmatmul.bf16.gmra.mxu0 %v218
  %v232 = vpop.f32.mrf.mxu0
  %v233 = vadd.f32 %v189, %v232
  %v234 = vpop.f32.mrf.mxu0
  %v235 = vadd.f32 %v194, %v234
  %236 = vmatmul.bf16.gmra.mxu0 %v221
  %v237 = vpop.f32.mrf.mxu0
  %v238 = vadd.f32 %v199, %v237
  %v239 = vpop.f32.mrf.mxu0
  %v240 = vadd.f32 %v204, %v239
  %241 = vdwg.mxu0
  %v242 = vmax.f32 %v233, 0.0
  %v243 = vmax.f32 %v235, 0.0
  %v244 = vmax.f32 %v238, 0.0
  %v245 = vmax.f32 %v240, 0.0
  %v246 = vld [vmem:[%s5] sm:$0xf]
  %v247 = vld [vmem:[%s5 + $0x4] sm:$0xf]
  %v248 = vld [vmem:[%s5 + $0x8] sm:$0xf]
  %v249 = vld [vmem:[%s5 + $0xc] sm:$0xf]
  %v250 = vunpack.c.l.bf16 %v246
  %v251 = vunpack.c.l.bf16 %v247
  %v252 = vunpack.c.l.bf16 %v248
  %v253 = vunpack.c.l.bf16 %v249
  %255 = vset.pattern.permute.xlu0 0
  %256 = vperm.xlu0 %255, %v250
  %v257 = vpop.permute.xlu0 %256
  %260 = vset.pattern.permute.xlu0 0
  %261 = vperm.xlu0 %260, %v251
  %v262 = vpop.permute.xlu0 %261
  %265 = vset.pattern.permute.xlu0 0
  %266 = vperm.xlu0 %265, %v252
  %v267 = vpop.permute.xlu0 %266
  %270 = vset.pattern.permute.xlu0 0
  %271 = vperm.xlu0 %270, %v253
  %v272 = vpop.permute.xlu0 %271
  %v274 = vmul.f32 %v242, %v257
  %v275 = vmul.f32 %v243, %v262
  %v276 = vmul.f32 %v244, %v267
  %v277 = vmul.f32 %v245, %v272
  %v278 = vadd.f32 %v274, %v275
  %v279 = vadd.f32 %v278, %v276
  %v280 = vadd.f32 %v279, %v277
  %v281 = vrot.slane %v280, 4
  %v282 = vadd.f32 %v280, %v281
  %v283 = vrot.slane %v282, 2
  %v284 = vadd.f32 %v282, %v283
  %v285 = vrot.slane %v284, 1
  %v286 = vadd.f32 %v284, %v285
  %s287 = sld [smem:[#allocation2]]
  %v288 = vstv %s287
  %v289 = vadd.f32 %v286, %v288
  %290 = vst [vmem:[%s7] sm:$0x1] %v289
  // Predicated region
  $region30: #{_critic_forward_impl.1} parent=0 // pred_check
    _
  $region31: #{_critic_forward_impl.1} parent=0 // pred_check_branch
    %292 = sbr.rel (0) target = $region33
  $region32: #{_critic_forward_impl.1} parent=0 // pred_region
    _
  $region33: #{_critic_forward_impl.1} parent=0 // pred_fallthru
    _
  // Predicated region
  $region34: #{_critic_forward_impl.1} parent=0 // pred_check
    _
  $region35: #{_critic_forward_impl.1} parent=0 // pred_check_branch
    %294 = sbr.rel (0) target = $region37
  $region36: #{_critic_forward_impl.1} parent=0 // pred_region
    _
  $region37: #{_critic_forward_impl.1} parent=0 // pred_fallthru
    _

</llo_original>
